<compile_context>
chip_gen: v7x
topology: tpu7x:2x2x1
jax: 0.10.0
libtpu: 0.0.40
codegen_flags: <defaults>
</compile_context>

<pallas_src>
import jax
import jax.numpy as jnp
from jax.experimental import pallas as pl
from jax.experimental.pallas import tpu as pltpu


def _lstm_last_step_kernel(x_ref, wih_ref, whh_ref, b_ref, o_ref):
    """One batch tile of a unidirectional LSTM; writes h at the last time step.

    x_ref:   (L, TB, H)   time-major input sequence, native dtype
    wih_ref: (H, 4*HL)    W_ih^T  (PyTorch gate order i, f, g, o)
    whh_ref: (HL, 4*HL)   W_hh^T
    b_ref:   (1, 4*HL)    b_ih + b_hh
    o_ref:   (TB, HL)     output: h_{L-1}
    """
    L, TB, H = x_ref.shape
    HL = o_ref.shape[-1]

    # Cast to f32 inside the kernel (inputs arrive in native dtype, e.g. bf16).
    wih = wih_ref[...].astype(jnp.float32)
    whh = whh_ref[...].astype(jnp.float32)
    bias = b_ref[...].astype(jnp.float32)

    # Input contribution for every time step in a single MXU matmul.
    x2d = x_ref[...].astype(jnp.float32).reshape(L * TB, H)
    gx = jnp.dot(x2d, wih, preferred_element_type=jnp.float32) + bias  # (L*TB, 4HL)

    h = jnp.zeros((TB, HL), jnp.float32)
    c = jnp.zeros((TB, HL), jnp.float32)

    # L = num_hidden_layers is small (~8-24): unroll statically (static slices).
    for t in range(L):
        gates = gx[t * TB:(t + 1) * TB, :] + jnp.dot(
            h, whh, preferred_element_type=jnp.float32)          # (TB, 4HL)
        i_g = jax.nn.sigmoid(gates[:, 0 * HL:1 * HL])
        f_g = jax.nn.sigmoid(gates[:, 1 * HL:2 * HL])
        g_g = jnp.tanh(gates[:, 2 * HL:3 * HL])
        o_g = jax.nn.sigmoid(gates[:, 3 * HL:4 * HL])
        c = f_g * c + i_g * g_g
        h = o_g * jnp.tanh(c)

    o_ref[...] = h.astype(o_ref.dtype)


def _pick_batch_tile(B: int) -> int:
    # Batch tile must equal B or be a multiple of 8 (second-minor dim rule).
    if B % 8 != 0:
        return B
    tb = 8
    while tb * 2 <= min(B, 128) and B % (tb * 2) == 0:
        tb *= 2
    return tb


def lstm_last_step(x_seq, w_ih, w_hh, b_ih, b_hh):
    """x_seq: (B, L, H) native dtype.  PyTorch-layout LSTM weights:
    w_ih (4*HL, H), w_hh (4*HL, HL), b_ih/b_hh (4*HL,).
    Returns h at the last time step: (B, HL) float32."""
    B, L, H = x_seq.shape
    HL4 = w_ih.shape[0]
    HL = HL4 // 4

    # One-time layout plumbing (cheap, no dtype widening of activations):
    x_tm = jnp.transpose(x_seq, (1, 0, 2))            # (L, B, H) time-major
    wih_t = jnp.transpose(w_ih)                       # (H, 4HL)
    whh_t = jnp.transpose(w_hh)                       # (HL, 4HL)
    b2 = (b_ih + b_hh).reshape(1, HL4)                # (1, 4HL)

    TB = _pick_batch_tile(B)
    grid = (B // TB,)

    # Per-tile VMEM: (L,TB,H) input + weights, double-buffered; for production
    # sizes (L~12, TB<=128, H~1k) this stays well under the 32 MiB scoped
    # default on every generation (incl. v7x's 64 MiB physical VMEM).
    out = pl.pallas_call(
        _lstm_last_step_kernel,
        out_shape=jax.ShapeDtypeStruct((B, HL), jnp.float32),
        grid_spec=pltpu.PrefetchScalarGridSpec(
            num_scalar_prefetch=0,
            grid=grid,
            in_specs=[
                pl.BlockSpec((L, TB, H), lambda bt: (0, bt, 0)),   # activations
                pl.BlockSpec((H, HL4), lambda bt: (0, 0)),         # W_ih^T (shared)
                pl.BlockSpec((HL, HL4), lambda bt: (0, 0)),        # W_hh^T (shared)
                pl.BlockSpec((1, HL4), lambda bt: (0, 0)),         # bias   (shared)
            ],
            out_specs=pl.BlockSpec((TB, HL), lambda bt: (bt, 0)),
        ),
        compiler_params=pltpu.CompilerParams(
            dimension_semantics=("parallel",),
        ),
    )(x_tm, wih_t, whh_t, b2)
    return out


def lstm_pooling_forward(hidden_states, w_ih, w_hh, b_ih, b_hh,
                         num_hidden_layers, hidden_size):
    """Faithful LSTMPooling.forward (eval mode, is_lstm=True, bidirectional=False).

    hidden_states: tuple/list of (num_hidden_layers + 1) arrays of shape (B, S, H)
    Returns (B, hidden_lstm_size) float32.
    """
    all_hidden_states = jnp.stack(hidden_states)                       # (L+1,B,S,H)
    # torch: stack([all_hidden_states[l][:, 0].squeeze() for l in 1..L], dim=-1)
    cls_per_layer = [all_hidden_states[li][:, 0]
                     for li in range(1, num_hidden_layers + 1)]         # each (B, H)
    hs = jnp.stack(cls_per_layer, axis=-1)                              # (B, H, L)
    # torch: .view(-1, L, H) -- row-major reinterpretation (feature scramble kept
    # intentionally to match the reference module).
    hs = hs.reshape(-1, num_hidden_layers, hidden_size)                 # (B, L, H)

    out = lstm_last_step(hs, w_ih, w_hh, b_ih, b_hh)                    # (B, HL)
    # Dropout: identity in eval mode.
    return out


def _reference(hidden_states, w_ih, w_hh, b_ih, b_hh,
               num_hidden_layers, hidden_size):
    """Pure-JAX reference mirroring the PyTorch forward (eval mode)."""
    all_h = jnp.stack(hidden_states)
    cls = [all_h[li][:, 0] for li in range(1, num_hidden_layers + 1)]
    hs = jnp.stack(cls, axis=-1).reshape(-1, num_hidden_layers, hidden_size)

    HL = w_ih.shape[0] // 4
    B = hs.shape[0]
    wih_t = w_ih.T.astype(jnp.float32)
    whh_t = w_hh.T.astype(jnp.float32)
    bias = (b_ih + b_hh).astype(jnp.float32)

    h = jnp.zeros((B, HL), jnp.float32)
    c = jnp.zeros((B, HL), jnp.float32)
    for t in range(num_hidden_layers):
        g = hs[:, t, :].astype(jnp.float32) @ wih_t + h @ whh_t + bias
        i_g = jax.nn.sigmoid(g[:, :HL])
        f_g = jax.nn.sigmoid(g[:, HL:2 * HL])
        g_g = jnp.tanh(g[:, 2 * HL:3 * HL])
        o_g = jax.nn.sigmoid(g[:, 3 * HL:])
        c = f_g * c + i_g * g_g
        h = o_g * jnp.tanh(c)
    return h  # out[:, -1, :]; dropout is identity in eval


if __name__ == "__main__":
    # Small config consistent with the module:
    #   backbone: num_hidden_layers=8, hidden_size=32, seq=8, batch=2
    #   pooling:  hidden_lstm_size=32, is_lstm=True, bidirectional=False
    B, S, H = 2, 8, 32
    num_hidden_layers = 8
    hidden_lstm_size = 32

    key = jax.random.PRNGKey(0)
    keys = jax.random.split(key, num_hidden_layers + 1 + 4)

    # (L+1) backbone hidden states, each (B, S, H).
    hidden_states = tuple(
        jax.random.normal(keys[i], (B, S, H), dtype=jnp.float32)
        for i in range(num_hidden_layers + 1)
    )

    # PyTorch-layout LSTM parameters (gate order i, f, g, o).
    scale = 1.0 / jnp.sqrt(jnp.float32(hidden_lstm_size))
    w_ih = scale * jax.random.normal(keys[-4], (4 * hidden_lstm_size, H), jnp.float32)
    w_hh = scale * jax.random.normal(keys[-3], (4 * hidden_lstm_size, hidden_lstm_size), jnp.float32)
    b_ih = scale * jax.random.normal(keys[-2], (4 * hidden_lstm_size,), jnp.float32)
    b_hh = scale * jax.random.normal(keys[-1], (4 * hidden_lstm_size,), jnp.float32)

    out = lstm_pooling_forward(hidden_states, w_ih, w_hh, b_ih, b_hh,
                               num_hidden_layers, H)
    jax.block_until_ready(out)

    ref = _reference(hidden_states, w_ih, w_hh, b_ih, b_hh, num_hidden_layers, H)
    assert out.shape == (B, hidden_lstm_size), out.shape
    assert jnp.allclose(out, ref, atol=1e-4, rtol=1e-4), (
        "mismatch vs reference: max abs diff = %g" % float(jnp.max(jnp.abs(out - ref))))
    print("KERNEL_OK")
</pallas_src>

<mosaic_0001>
module attributes {stable_mosaic.version = 11 : i64} {
  func.func @_lstm_last_step_kernel(%arg0: i32, %arg1: memref<8x2x32xf32, #tpu.memory_space<vmem>>, %arg2: memref<32x128xf32, #tpu.memory_space<vmem>>, %arg3: memref<32x128xf32, #tpu.memory_space<vmem>>, %arg4: memref<1x128xf32, #tpu.memory_space<vmem>>, %arg5: memref<2x32xf32, #tpu.memory_space<vmem>>) attributes {dimension_semantics = [#tpu.dimension_semantics<parallel>], iteration_bounds = array<i64: 1>, scalar_prefetch = 0 : i64, scratch_operands = 0 : i64, tpu.core_type = #tpu.core_type<tc>, window_params = [{transform_indices = @transform_0, window_bounds = array<i64: 8, 2, 32>}, {pipeline_mode = #tpu.pipeline_mode<synchronous>, transform_indices = @transform_1, window_bounds = array<i64: 32, 128>}, {pipeline_mode = #tpu.pipeline_mode<synchronous>, transform_indices = @transform_2, window_bounds = array<i64: 32, 128>}, {pipeline_mode = #tpu.pipeline_mode<synchronous>, transform_indices = @transform_3, window_bounds = array<i64: 1, 128>}, {transform_indices = @transform_4, window_bounds = array<i64: 2, 32>}]} {
    %c0 = arith.constant 0 : index
    %c0_0 = arith.constant 0 : index
    %0 = vector.load %arg2[%c0, %c0_0] : memref<32x128xf32, #tpu.memory_space<vmem>>, vector<32x128xf32>
    %c0_1 = arith.constant 0 : index
    %c0_2 = arith.constant 0 : index
    %1 = vector.load %arg3[%c0_1, %c0_2] : memref<32x128xf32, #tpu.memory_space<vmem>>, vector<32x128xf32>
    %c0_3 = arith.constant 0 : index
    %c0_4 = arith.constant 0 : index
    %2 = vector.load %arg4[%c0_3, %c0_4] : memref<1x128xf32, #tpu.memory_space<vmem>>, vector<1x128xf32>
    %c0_5 = arith.constant 0 : index
    %c0_6 = arith.constant 0 : index
    %c0_7 = arith.constant 0 : index
    %3 = vector.load %arg1[%c0_5, %c0_6, %c0_7] : memref<8x2x32xf32, #tpu.memory_space<vmem>>, vector<8x2x32xf32>
    %4 = vector.shape_cast %3 : vector<8x2x32xf32> to vector<16x32xf32>
    %cst = arith.constant dense<0.000000e+00> : vector<16x128xf32>
    %5 = tpu.matmul %4, %0, %cst {dimension_numbers = #tpu.dot_dimension_numbers<[1], [0], [0], [1], [0, 0, 1, 1], [], []>} : vector<16x32xf32>, vector<32x128xf32>, vector<16x128xf32> -> vector<16x128xf32>
    %6 = vector.broadcast %2 : vector<1x128xf32> to vector<16x128xf32>
    %7 = arith.addf %5, %6 : vector<16x128xf32>
    %cst_8 = arith.constant 0.000000e+00 : f32
    %8 = vector.broadcast %cst_8 : f32 to vector<2x32xf32>
    %cst_9 = arith.constant 0.000000e+00 : f32
    %9 = vector.broadcast %cst_9 : f32 to vector<2x32xf32>
    %10 = vector.extract_strided_slice %7 {offsets = [0, 0], sizes = [2, 128], strides = [1, 1]} : vector<16x128xf32> to vector<2x128xf32>
    %cst_10 = arith.constant dense<0.000000e+00> : vector<2x128xf32>
    %11 = tpu.matmul %8, %1, %cst_10 {dimension_numbers = #tpu.dot_dimension_numbers<[1], [0], [0], [1], [0, 0, 1, 1], [], []>} : vector<2x32xf32>, vector<32x128xf32>, vector<2x128xf32> -> vector<2x128xf32>
    %12 = arith.addf %10, %11 : vector<2x128xf32>
    %13 = vector.extract_strided_slice %12 {offsets = [0, 0], sizes = [2, 32], strides = [1, 1]} : vector<2x128xf32> to vector<2x32xf32>
    %14 = arith.negf %13 : vector<2x32xf32>
    %15 = math.exp %14 : vector<2x32xf32>
    %cst_11 = arith.constant 1.000000e+00 : f32
    %16 = vector.broadcast %cst_11 : f32 to vector<2x32xf32>
    %17 = arith.addf %16, %15 : vector<2x32xf32>
    %18 = arith.divf %16, %17 : vector<2x32xf32>
    %19 = vector.extract_strided_slice %12 {offsets = [0, 32], sizes = [2, 32], strides = [1, 1]} : vector<2x128xf32> to vector<2x32xf32>
    %20 = arith.negf %19 : vector<2x32xf32>
    %21 = math.exp %20 : vector<2x32xf32>
    %cst_12 = arith.constant 1.000000e+00 : f32
    %22 = vector.broadcast %cst_12 : f32 to vector<2x32xf32>
    %23 = arith.addf %22, %21 : vector<2x32xf32>
    %24 = arith.divf %22, %23 : vector<2x32xf32>
    %25 = vector.extract_strided_slice %12 {offsets = [0, 64], sizes = [2, 32], strides = [1, 1]} : vector<2x128xf32> to vector<2x32xf32>
    %26 = math.tanh %25 : vector<2x32xf32>
    %27 = vector.extract_strided_slice %12 {offsets = [0, 96], sizes = [2, 32], strides = [1, 1]} : vector<2x128xf32> to vector<2x32xf32>
    %28 = arith.negf %27 : vector<2x32xf32>
    %29 = math.exp %28 : vector<2x32xf32>
    %cst_13 = arith.constant 1.000000e+00 : f32
    %30 = vector.broadcast %cst_13 : f32 to vector<2x32xf32>
    %31 = arith.addf %30, %29 : vector<2x32xf32>
    %32 = arith.divf %30, %31 : vector<2x32xf32>
    %33 = arith.mulf %24, %9 : vector<2x32xf32>
    %34 = arith.mulf %18, %26 : vector<2x32xf32>
    %35 = arith.addf %33, %34 : vector<2x32xf32>
    %36 = math.tanh %35 : vector<2x32xf32>
    %37 = arith.mulf %32, %36 : vector<2x32xf32>
    %38 = vector.extract_strided_slice %7 {offsets = [2, 0], sizes = [2, 128], strides = [1, 1]} : vector<16x128xf32> to vector<2x128xf32>
    %cst_14 = arith.constant dense<0.000000e+00> : vector<2x128xf32>
    %39 = tpu.matmul %37, %1, %cst_14 {dimension_numbers = #tpu.dot_dimension_numbers<[1], [0], [0], [1], [0, 0, 1, 1], [], []>} : vector<2x32xf32>, vector<32x128xf32>, vector<2x128xf32> -> vector<2x128xf32>
    %40 = arith.addf %38, %39 : vector<2x128xf32>
    %41 = vector.extract_strided_slice %40 {offsets = [0, 0], sizes = [2, 32], strides = [1, 1]} : vector<2x128xf32> to vector<2x32xf32>
    %42 = arith.negf %41 : vector<2x32xf32>
    %43 = math.exp %42 : vector<2x32xf32>
    %cst_15 = arith.constant 1.000000e+00 : f32
    %44 = vector.broadcast %cst_15 : f32 to vector<2x32xf32>
    %45 = arith.addf %44, %43 : vector<2x32xf32>
    %46 = arith.divf %44, %45 : vector<2x32xf32>
    %47 = vector.extract_strided_slice %40 {offsets = [0, 32], sizes = [2, 32], strides = [1, 1]} : vector<2x128xf32> to vector<2x32xf32>
    %48 = arith.negf %47 : vector<2x32xf32>
    %49 = math.exp %48 : vector<2x32xf32>
    %cst_16 = arith.constant 1.000000e+00 : f32
    %50 = vector.broadcast %cst_16 : f32 to vector<2x32xf32>
    %51 = arith.addf %50, %49 : vector<2x32xf32>
    %52 = arith.divf %50, %51 : vector<2x32xf32>
    %53 = vector.extract_strided_slice %40 {offsets = [0, 64], sizes = [2, 32], strides = [1, 1]} : vector<2x128xf32> to vector<2x32xf32>
    %54 = math.tanh %53 : vector<2x32xf32>
    %55 = vector.extract_strided_slice %40 {offsets = [0, 96], sizes = [2, 32], strides = [1, 1]} : vector<2x128xf32> to vector<2x32xf32>
    %56 = arith.negf %55 : vector<2x32xf32>
    %57 = math.exp %56 : vector<2x32xf32>
    %cst_17 = arith.constant 1.000000e+00 : f32
    %58 = vector.broadcast %cst_17 : f32 to vector<2x32xf32>
    %59 = arith.addf %58, %57 : vector<2x32xf32>
    %60 = arith.divf %58, %59 : vector<2x32xf32>
    %61 = arith.mulf %52, %35 : vector<2x32xf32>
    %62 = arith.mulf %46, %54 : vector<2x32xf32>
    %63 = arith.addf %61, %62 : vector<2x32xf32>
    %64 = math.tanh %63 : vector<2x32xf32>
    %65 = arith.mulf %60, %64 : vector<2x32xf32>
    %66 = vector.extract_strided_slice %7 {offsets = [4, 0], sizes = [2, 128], strides = [1, 1]} : vector<16x128xf32> to vector<2x128xf32>
    %cst_18 = arith.constant dense<0.000000e+00> : vector<2x128xf32>
    %67 = tpu.matmul %65, %1, %cst_18 {dimension_numbers = #tpu.dot_dimension_numbers<[1], [0], [0], [1], [0, 0, 1, 1], [], []>} : vector<2x32xf32>, vector<32x128xf32>, vector<2x128xf32> -> vector<2x128xf32>
    %68 = arith.addf %66, %67 : vector<2x128xf32>
    %69 = vector.extract_strided_slice %68 {offsets = [0, 0], sizes = [2, 32], strides = [1, 1]} : vector<2x128xf32> to vector<2x32xf32>
    %70 = arith.negf %69 : vector<2x32xf32>
    %71 = math.exp %70 : vector<2x32xf32>
    %cst_19 = arith.constant 1.000000e+00 : f32
    %72 = vector.broadcast %cst_19 : f32 to vector<2x32xf32>
    %73 = arith.addf %72, %71 : vector<2x32xf32>
    %74 = arith.divf %72, %73 : vector<2x32xf32>
    %75 = vector.extract_strided_slice %68 {offsets = [0, 32], sizes = [2, 32], strides = [1, 1]} : vector<2x128xf32> to vector<2x32xf32>
    %76 = arith.negf %75 : vector<2x32xf32>
    %77 = math.exp %76 : vector<2x32xf32>
    %cst_20 = arith.constant 1.000000e+00 : f32
    %78 = vector.broadcast %cst_20 : f32 to vector<2x32xf32>
    %79 = arith.addf %78, %77 : vector<2x32xf32>
    %80 = arith.divf %78, %79 : vector<2x32xf32>
    %81 = vector.extract_strided_slice %68 {offsets = [0, 64], sizes = [2, 32], strides = [1, 1]} : vector<2x128xf32> to vector<2x32xf32>
    %82 = math.tanh %81 : vector<2x32xf32>
    %83 = vector.extract_strided_slice %68 {offsets = [0, 96], sizes = [2, 32], strides = [1, 1]} : vector<2x128xf32> to vector<2x32xf32>
    %84 = arith.negf %83 : vector<2x32xf32>
    %85 = math.exp %84 : vector<2x32xf32>
    %cst_21 = arith.constant 1.000000e+00 : f32
    %86 = vector.broadcast %cst_21 : f32 to vector<2x32xf32>
    %87 = arith.addf %86, %85 : vector<2x32xf32>
    %88 = arith.divf %86, %87 : vector<2x32xf32>
    %89 = arith.mulf %80, %63 : vector<2x32xf32>
    %90 = arith.mulf %74, %82 : vector<2x32xf32>
    %91 = arith.addf %89, %90 : vector<2x32xf32>
    %92 = math.tanh %91 : vector<2x32xf32>
    %93 = arith.mulf %88, %92 : vector<2x32xf32>
    %94 = vector.extract_strided_slice %7 {offsets = [6, 0], sizes = [2, 128], strides = [1, 1]} : vector<16x128xf32> to vector<2x128xf32>
    %cst_22 = arith.constant dense<0.000000e+00> : vector<2x128xf32>
    %95 = tpu.matmul %93, %1, %cst_22 {dimension_numbers = #tpu.dot_dimension_numbers<[1], [0], [0], [1], [0, 0, 1, 1], [], []>} : vector<2x32xf32>, vector<32x128xf32>, vector<2x128xf32> -> vector<2x128xf32>
    %96 = arith.addf %94, %95 : vector<2x128xf32>
    %97 = vector.extract_strided_slice %96 {offsets = [0, 0], sizes = [2, 32], strides = [1, 1]} : vector<2x128xf32> to vector<2x32xf32>
    %98 = arith.negf %97 : vector<2x32xf32>
    %99 = math.exp %98 : vector<2x32xf32>
    %cst_23 = arith.constant 1.000000e+00 : f32
    %100 = vector.broadcast %cst_23 : f32 to vector<2x32xf32>
    %101 = arith.addf %100, %99 : vector<2x32xf32>
    %102 = arith.divf %100, %101 : vector<2x32xf32>
    %103 = vector.extract_strided_slice %96 {offsets = [0, 32], sizes = [2, 32], strides = [1, 1]} : vector<2x128xf32> to vector<2x32xf32>
    %104 = arith.negf %103 : vector<2x32xf32>
    %105 = math.exp %104 : vector<2x32xf32>
    %cst_24 = arith.constant 1.000000e+00 : f32
    %106 = vector.broadcast %cst_24 : f32 to vector<2x32xf32>
    %107 = arith.addf %106, %105 : vector<2x32xf32>
    %108 = arith.divf %106, %107 : vector<2x32xf32>
    %109 = vector.extract_strided_slice %96 {offsets = [0, 64], sizes = [2, 32], strides = [1, 1]} : vector<2x128xf32> to vector<2x32xf32>
    %110 = math.tanh %109 : vector<2x32xf32>
    %111 = vector.extract_strided_slice %96 {offsets = [0, 96], sizes = [2, 32], strides = [1, 1]} : vector<2x128xf32> to vector<2x32xf32>
    %112 = arith.negf %111 : vector<2x32xf32>
    %113 = math.exp %112 : vector<2x32xf32>
    %cst_25 = arith.constant 1.000000e+00 : f32
    %114 = vector.broadcast %cst_25 : f32 to vector<2x32xf32>
    %115 = arith.addf %114, %113 : vector<2x32xf32>
    %116 = arith.divf %114, %115 : vector<2x32xf32>
    %117 = arith.mulf %108, %91 : vector<2x32xf32>
    %118 = arith.mulf %102, %110 : vector<2x32xf32>
    %119 = arith.addf %117, %118 : vector<2x32xf32>
    %120 = math.tanh %119 : vector<2x32xf32>
    %121 = arith.mulf %116, %120 : vector<2x32xf32>
    %122 = vector.extract_strided_slice %7 {offsets = [8, 0], sizes = [2, 128], strides = [1, 1]} : vector<16x128xf32> to vector<2x128xf32>
    %cst_26 = arith.constant dense<0.000000e+00> : vector<2x128xf32>
    %123 = tpu.matmul %121, %1, %cst_26 {dimension_numbers = #tpu.dot_dimension_numbers<[1], [0], [0], [1], [0, 0, 1, 1], [], []>} : vector<2x32xf32>, vector<32x128xf32>, vector<2x128xf32> -> vector<2x128xf32>
    %124 = arith.addf %122, %123 : vector<2x128xf32>
    %125 = vector.extract_strided_slice %124 {offsets = [0, 0], sizes = [2, 32], strides = [1, 1]} : vector<2x128xf32> to vector<2x32xf32>
    %126 = arith.negf %125 : vector<2x32xf32>
    %127 = math.exp %126 : vector<2x32xf32>
    %cst_27 = arith.constant 1.000000e+00 : f32
    %128 = vector.broadcast %cst_27 : f32 to vector<2x32xf32>
    %129 = arith.addf %128, %127 : vector<2x32xf32>
    %130 = arith.divf %128, %129 : vector<2x32xf32>
    %131 = vector.extract_strided_slice %124 {offsets = [0, 32], sizes = [2, 32], strides = [1, 1]} : vector<2x128xf32> to vector<2x32xf32>
    %132 = arith.negf %131 : vector<2x32xf32>
    %133 = math.exp %132 : vector<2x32xf32>
    %cst_28 = arith.constant 1.000000e+00 : f32
    %134 = vector.broadcast %cst_28 : f32 to vector<2x32xf32>
    %135 = arith.addf %134, %133 : vector<2x32xf32>
    %136 = arith.divf %134, %135 : vector<2x32xf32>
    %137 = vector.extract_strided_slice %124 {offsets = [0, 64], sizes = [2, 32], strides = [1, 1]} : vector<2x128xf32> to vector<2x32xf32>
    %138 = math.tanh %137 : vector<2x32xf32>
    %139 = vector.extract_strided_slice %124 {offsets = [0, 96], sizes = [2, 32], strides = [1, 1]} : vector<2x128xf32> to vector<2x32xf32>
    %140 = arith.negf %139 : vector<2x32xf32>
    %141 = math.exp %140 : vector<2x32xf32>
    %cst_29 = arith.constant 1.000000e+00 : f32
    %142 = vector.broadcast %cst_29 : f32 to vector<2x32xf32>
    %143 = arith.addf %142, %141 : vector<2x32xf32>
    %144 = arith.divf %142, %143 : vector<2x32xf32>
    %145 = arith.mulf %136, %119 : vector<2x32xf32>
    %146 = arith.mulf %130, %138 : vector<2x32xf32>
    %147 = arith.addf %145, %146 : vector<2x32xf32>
    %148 = math.tanh %147 : vector<2x32xf32>
    %149 = arith.mulf %144, %148 : vector<2x32xf32>
    %150 = vector.extract_strided_slice %7 {offsets = [10, 0], sizes = [2, 128], strides = [1, 1]} : vector<16x128xf32> to vector<2x128xf32>
    %cst_30 = arith.constant dense<0.000000e+00> : vector<2x128xf32>
    %151 = tpu.matmul %149, %1, %cst_30 {dimension_numbers = #tpu.dot_dimension_numbers<[1], [0], [0], [1], [0, 0, 1, 1], [], []>} : vector<2x32xf32>, vector<32x128xf32>, vector<2x128xf32> -> vector<2x128xf32>
    %152 = arith.addf %150, %151 : vector<2x128xf32>
    %153 = vector.extract_strided_slice %152 {offsets = [0, 0], sizes = [2, 32], strides = [1, 1]} : vector<2x128xf32> to vector<2x32xf32>
    %154 = arith.negf %153 : vector<2x32xf32>
    %155 = math.exp %154 : vector<2x32xf32>
    %cst_31 = arith.constant 1.000000e+00 : f32
    %156 = vector.broadcast %cst_31 : f32 to vector<2x32xf32>
    %157 = arith.addf %156, %155 : vector<2x32xf32>
    %158 = arith.divf %156, %157 : vector<2x32xf32>
    %159 = vector.extract_strided_slice %152 {offsets = [0, 32], sizes = [2, 32], strides = [1, 1]} : vector<2x128xf32> to vector<2x32xf32>
    %160 = arith.negf %159 : vector<2x32xf32>
    %161 = math.exp %160 : vector<2x32xf32>
    %cst_32 = arith.constant 1.000000e+00 : f32
    %162 = vector.broadcast %cst_32 : f32 to vector<2x32xf32>
    %163 = arith.addf %162, %161 : vector<2x32xf32>
    %164 = arith.divf %162, %163 : vector<2x32xf32>
    %165 = vector.extract_strided_slice %152 {offsets = [0, 64], sizes = [2, 32], strides = [1, 1]} : vector<2x128xf32> to vector<2x32xf32>
    %166 = math.tanh %165 : vector<2x32xf32>
    %167 = vector.extract_strided_slice %152 {offsets = [0, 96], sizes = [2, 32], strides = [1, 1]} : vector<2x128xf32> to vector<2x32xf32>
    %168 = arith.negf %167 : vector<2x32xf32>
    %169 = math.exp %168 : vector<2x32xf32>
    %cst_33 = arith.constant 1.000000e+00 : f32
    %170 = vector.broadcast %cst_33 : f32 to vector<2x32xf32>
    %171 = arith.addf %170, %169 : vector<2x32xf32>
    %172 = arith.divf %170, %171 : vector<2x32xf32>
    %173 = arith.mulf %164, %147 : vector<2x32xf32>
    %174 = arith.mulf %158, %166 : vector<2x32xf32>
    %175 = arith.addf %173, %174 : vector<2x32xf32>
    %176 = math.tanh %175 : vector<2x32xf32>
    %177 = arith.mulf %172, %176 : vector<2x32xf32>
    %178 = vector.extract_strided_slice %7 {offsets = [12, 0], sizes = [2, 128], strides = [1, 1]} : vector<16x128xf32> to vector<2x128xf32>
    %cst_34 = arith.constant dense<0.000000e+00> : vector<2x128xf32>
    %179 = tpu.matmul %177, %1, %cst_34 {dimension_numbers = #tpu.dot_dimension_numbers<[1], [0], [0], [1], [0, 0, 1, 1], [], []>} : vector<2x32xf32>, vector<32x128xf32>, vector<2x128xf32> -> vector<2x128xf32>
    %180 = arith.addf %178, %179 : vector<2x128xf32>
    %181 = vector.extract_strided_slice %180 {offsets = [0, 0], sizes = [2, 32], strides = [1, 1]} : vector<2x128xf32> to vector<2x32xf32>
    %182 = arith.negf %181 : vector<2x32xf32>
    %183 = math.exp %182 : vector<2x32xf32>
    %cst_35 = arith.constant 1.000000e+00 : f32
    %184 = vector.broadcast %cst_35 : f32 to vector<2x32xf32>
    %185 = arith.addf %184, %183 : vector<2x32xf32>
    %186 = arith.divf %184, %185 : vector<2x32xf32>
    %187 = vector.extract_strided_slice %180 {offsets = [0, 32], sizes = [2, 32], strides = [1, 1]} : vector<2x128xf32> to vector<2x32xf32>
    %188 = arith.negf %187 : vector<2x32xf32>
    %189 = math.exp %188 : vector<2x32xf32>
    %cst_36 = arith.constant 1.000000e+00 : f32
    %190 = vector.broadcast %cst_36 : f32 to vector<2x32xf32>
    %191 = arith.addf %190, %189 : vector<2x32xf32>
    %192 = arith.divf %190, %191 : vector<2x32xf32>
    %193 = vector.extract_strided_slice %180 {offsets = [0, 64], sizes = [2, 32], strides = [1, 1]} : vector<2x128xf32> to vector<2x32xf32>
    %194 = math.tanh %193 : vector<2x32xf32>
    %195 = vector.extract_strided_slice %180 {offsets = [0, 96], sizes = [2, 32], strides = [1, 1]} : vector<2x128xf32> to vector<2x32xf32>
    %196 = arith.negf %195 : vector<2x32xf32>
    %197 = math.exp %196 : vector<2x32xf32>
    %cst_37 = arith.constant 1.000000e+00 : f32
    %198 = vector.broadcast %cst_37 : f32 to vector<2x32xf32>
    %199 = arith.addf %198, %197 : vector<2x32xf32>
    %200 = arith.divf %198, %199 : vector<2x32xf32>
    %201 = arith.mulf %192, %175 : vector<2x32xf32>
    %202 = arith.mulf %186, %194 : vector<2x32xf32>
    %203 = arith.addf %201, %202 : vector<2x32xf32>
    %204 = math.tanh %203 : vector<2x32xf32>
    %205 = arith.mulf %200, %204 : vector<2x32xf32>
    %206 = vector.extract_strided_slice %7 {offsets = [14, 0], sizes = [2, 128], strides = [1, 1]} : vector<16x128xf32> to vector<2x128xf32>
    %cst_38 = arith.constant dense<0.000000e+00> : vector<2x128xf32>
    %207 = tpu.matmul %205, %1, %cst_38 {dimension_numbers = #tpu.dot_dimension_numbers<[1], [0], [0], [1], [0, 0, 1, 1], [], []>} : vector<2x32xf32>, vector<32x128xf32>, vector<2x128xf32> -> vector<2x128xf32>
    %208 = arith.addf %206, %207 : vector<2x128xf32>
    %209 = vector.extract_strided_slice %208 {offsets = [0, 0], sizes = [2, 32], strides = [1, 1]} : vector<2x128xf32> to vector<2x32xf32>
    %210 = arith.negf %209 : vector<2x32xf32>
    %211 = math.exp %210 : vector<2x32xf32>
    %cst_39 = arith.constant 1.000000e+00 : f32
    %212 = vector.broadcast %cst_39 : f32 to vector<2x32xf32>
    %213 = arith.addf %212, %211 : vector<2x32xf32>
    %214 = arith.divf %212, %213 : vector<2x32xf32>
    %215 = vector.extract_strided_slice %208 {offsets = [0, 32], sizes = [2, 32], strides = [1, 1]} : vector<2x128xf32> to vector<2x32xf32>
    %216 = arith.negf %215 : vector<2x32xf32>
    %217 = math.exp %216 : vector<2x32xf32>
    %cst_40 = arith.constant 1.000000e+00 : f32
    %218 = vector.broadcast %cst_40 : f32 to vector<2x32xf32>
    %219 = arith.addf %218, %217 : vector<2x32xf32>
    %220 = arith.divf %218, %219 : vector<2x32xf32>
    %221 = vector.extract_strided_slice %208 {offsets = [0, 64], sizes = [2, 32], strides = [1, 1]} : vector<2x128xf32> to vector<2x32xf32>
    %222 = math.tanh %221 : vector<2x32xf32>
    %223 = vector.extract_strided_slice %208 {offsets = [0, 96], sizes = [2, 32], strides = [1, 1]} : vector<2x128xf32> to vector<2x32xf32>
    %224 = arith.negf %223 : vector<2x32xf32>
    %225 = math.exp %224 : vector<2x32xf32>
    %cst_41 = arith.constant 1.000000e+00 : f32
    %226 = vector.broadcast %cst_41 : f32 to vector<2x32xf32>
    %227 = arith.addf %226, %225 : vector<2x32xf32>
    %228 = arith.divf %226, %227 : vector<2x32xf32>
    %229 = arith.mulf %220, %203 : vector<2x32xf32>
    %230 = arith.mulf %214, %222 : vector<2x32xf32>
    %231 = arith.addf %229, %230 : vector<2x32xf32>
    %232 = math.tanh %231 : vector<2x32xf32>
    %233 = arith.mulf %228, %232 : vector<2x32xf32>
    %c0_42 = arith.constant 0 : index
    %c0_43 = arith.constant 0 : index
    %234 = vector.load %arg5[%c0_42, %c0_43] : memref<2x32xf32, #tpu.memory_space<vmem>>, vector<2x32xf32>
    tpu.vector_store %arg5[%c0_42, %c0_43], %233 {strides = array<i32>} : memref<2x32xf32, #tpu.memory_space<vmem>>, vector<2x32xf32>,
    return
  }
  func.func @transform_0(%arg0: i32) -> (i32, i32, i32) {
    %c0_i32 = arith.constant 0 : i32
    %c0_i32_0 = arith.constant 0 : i32
    %c0_i32_1 = arith.constant 0 : i32
    return %c0_i32, %arg0, %c0_i32_0 : i32, i32, i32
  }
  func.func @transform_1(%arg0: i32) -> (i32, i32) {
    %c0_i32 = arith.constant 0 : i32
    %c0_i32_0 = arith.constant 0 : i32
    %c0_i32_1 = arith.constant 0 : i32
    return %c0_i32, %c0_i32_0 : i32, i32
  }
  func.func @transform_2(%arg0: i32) -> (i32, i32) {
    %c0_i32 = arith.constant 0 : i32
    %c0_i32_0 = arith.constant 0 : i32
    %c0_i32_1 = arith.constant 0 : i32
    return %c0_i32, %c0_i32_0 : i32, i32
  }
  func.func @transform_3(%arg0: i32) -> (i32, i32) {
    %c0_i32 = arith.constant 0 : i32
    %c0_i32_0 = arith.constant 0 : i32
    %c0_i32_1 = arith.constant 0 : i32
    return %c0_i32, %c0_i32_0 : i32, i32
  }
  func.func @transform_4(%arg0: i32) -> (i32, i32) {
    %c0_i32 = arith.constant 0 : i32
    %c0_i32_0 = arith.constant 0 : i32
    return %arg0, %c0_i32 : i32, i32
  }
}

</mosaic_0001>

<llo_original>
// kernel: tpu_custom_call.1
$region0: #{tpu_custom_call.1}
  #allocation0 [shape = 'u32[]', space=smem, size = 0x4, offset = 0x4, fixed_abs, tag = 'smem constant byte address 0x4 - core index']
  #allocation1 [shape = 'u32[144,128]{1,0:T(1,128)}', space=vmem, size = 0x12000, scoped, tag = 'internal scratch']
  %s0 = inlined_call_operand.hbm [shape: f32[8,2,32], index: 0, kind: input, shape index: {}]
  %s1 = inlined_call_operand.hbm [shape: f32[32,128], index: 1, kind: input, shape index: {}]
  %s2 = inlined_call_operand.hbm [shape: f32[32,128], index: 2, kind: input, shape index: {}]
  %s3 = inlined_call_operand.vmem [shape: f32[1,128], index: 3, kind: input, shape index: {}]
  %s4 = inlined_call_operand.hbm [shape: f32[2,32], index: 4, kind: output, shape index: {}]
  %s5 = sld [smem:[#allocation0]]
  $region38: #{tpu_custom_call.1} parent=0
    _
  %s7 = ssub.s32 1, %s5
  %s8 = scalar_select 0, %s7, %s5
  $region1: #{tpu_custom_call.1} parent=0
    #allocation2 [shape = 'u8[8192]{0}', space=vmem, size = 0x2000, scoped, tag = 'input window, operand 0, single buffered']
    #allocation3 [shape = 's32[1]{0}', space=sflag, size = 0x4, scoped, tag = 'scoped memory for tpu_custom_call.1']
    #allocation4 [shape = 's32[1]{0}', space=sflag, size = 0x4, scoped, tag = 'scoped memory for tpu_custom_call.1']
    #allocation5 [shape = 'u8[16384]{0}', space=vmem, size = 0x4000, scoped, tag = 'input window, operand 1, single buffered']
    #allocation6 [shape = 's32[1]{0}', space=sflag, size = 0x4, scoped, tag = 'scoped memory for tpu_custom_call.1']
    #allocation7 [shape = 'u8[16384]{0}', space=vmem, size = 0x4000, scoped, tag = 'input window, operand 2, single buffered']
    #allocation8 [shape = 'u8[1024]{0}', space=vmem, size = 0x400, scoped, tag = 'output window, operand 0, single buffered']
    %9 = vsyncpa [#allocation3], 0
    %10 = vsyncpa [#allocation6], 0
    %11 = vsyncpa [#allocation4], 0
    // Predicated region
    $region2: #{tpu_custom_call.1} parent=1 // pred_check
      _
    $region3: #{tpu_custom_call.1} parent=1 // pred_check_branch
      %13 = sbr.rel (0) target = $region5
    $region4: #{tpu_custom_call.1} parent=1 // pred_region
      %s15 = ssub.s32 256, 256
      %16 = vsyncadd [#allocation3], %s15
      %s17 = sshll.u32 [#allocation2], 4
      %s18 = int_to_ptr.vmem [resolvable:$true] %s17
      %23 = dma.hbm_to_vmem [thread:$0]  %s0, 256, %s18, [#allocation3], 32, 32, 2
    $region5: #{tpu_custom_call.1} parent=1 // pred_fallthru
      _
    // Predicated region
    $region6: #{tpu_custom_call.1} parent=1 // pred_check
      _
    $region7: #{tpu_custom_call.1} parent=1 // pred_check_branch
      %25 = sbr.rel (0) target = $region9
    $region8: #{tpu_custom_call.1} parent=1 // pred_region
      %s27 = ssub.s32 512, 512
      %28 = vsyncadd [#allocation6], %s27
      %s29 = sshll.u32 [#allocation5], 4
      %s30 = int_to_ptr.vmem [resolvable:$true] %s29
      %35 = dma.hbm_to_vmem [thread:$0]  %s1, 512, %s30, [#allocation6], 128, 128, 8
    $region9: #{tpu_custom_call.1} parent=1 // pred_fallthru
      _
    // Predicated region
    $region10: #{tpu_custom_call.1} parent=1 // pred_check
      _
    $region11: #{tpu_custom_call.1} parent=1 // pred_check_branch
      %37 = sbr.rel (0) target = $region13
    $region12: #{tpu_custom_call.1} parent=1 // pred_region
      %s39 = ssub.s32 512, 512
      %40 = vsyncadd [#allocation6], %s39
      %s41 = sshll.u32 [#allocation7], 4
      %s42 = int_to_ptr.vmem [resolvable:$true] %s41
      %47 = dma.hbm_to_vmem [thread:$0]  %s2, 512, %s42, [#allocation6], 128, 128, 8
    $region13: #{tpu_custom_call.1} parent=1 // pred_fallthru
      _
    // Predicated region
    $region14: #{tpu_custom_call.1} parent=1 // pred_check
      _
    $region15: #{tpu_custom_call.1} parent=1 // pred_check_branch
      %49 = sbr.rel (0) target = $region17
    $region16: #{tpu_custom_call.1} parent=1 // pred_region
      _
    $region17: #{tpu_custom_call.1} parent=1 // pred_fallthru
      _
    // Predicated region
    $region18: #{tpu_custom_call.1} parent=1 // pred_check
      _
    $region19: #{tpu_custom_call.1} parent=1 // pred_check_branch
      %51 = sbr.rel (0) target = $region21
    $region20: #{tpu_custom_call.1} parent=1 // pred_region
      %52 = dma.done [#allocation3], 256
    $region21: #{tpu_custom_call.1} parent=1 // pred_fallthru
      _
    // Predicated region
    $region22: #{tpu_custom_call.1} parent=1 // pred_check
      _
    $region23: #{tpu_custom_call.1} parent=1 // pred_check_branch
      %54 = sbr.rel (0) target = $region25
    $region24: #{tpu_custom_call.1} parent=1 // pred_region
      %55 = dma.done [#allocation6], 512
    $region25: #{tpu_custom_call.1} parent=1 // pred_fallthru
      _
    // Predicated region
    $region26: #{tpu_custom_call.1} parent=1 // pred_check
      _
    $region27: #{tpu_custom_call.1} parent=1 // pred_check_branch
      %57 = sbr.rel (0) target = $region29
    $region28: #{tpu_custom_call.1} parent=1 // pred_region
      %58 = dma.done [#allocation6], 512
    $region29: #{tpu_custom_call.1} parent=1 // pred_fallthru
      _
    %v59 = vld [vmem:[#allocation5] sm:$0xff]
    %v60 = vld [vmem:[#allocation5 + $0x8] sm:$0xff]
    %v61 = vld [vmem:[#allocation5 + $0x10] sm:$0xff]
    %v62 = vld [vmem:[#allocation5 + $0x18] sm:$0xff]
    %v63 = vld [vmem:[#allocation7] sm:$0xff]
    %v64 = vld [vmem:[#allocation7 + $0x8] sm:$0xff]
    %v65 = vld [vmem:[#allocation7 + $0x10] sm:$0xff]
    %v66 = vld [vmem:[#allocation7 + $0x18] sm:$0xff]
    %v67 = vld [vmem:[%s3] sm:$0x1]
    %v68 = vld [vmem:[#allocation2] sm:$0x3]
    %v69 = vld [vmem:[#allocation2 + $0x2] sm:$0x3]
    %v70 = vld [vmem:[#allocation2 + $0x4] sm:$0x3]
    %v71 = vld [vmem:[#allocation2 + $0x6] sm:$0x3]
    %v72 = vld [vmem:[#allocation2 + $0x8] sm:$0x3]
    %v73 = vld [vmem:[#allocation2 + $0xa] sm:$0x3]
    %v74 = vld [vmem:[#allocation2 + $0xc] sm:$0x3]
    %v75 = vld [vmem:[#allocation2 + $0xe] sm:$0x3]
    %v77 = vlaneseq
    %v78 = vshrl.u32 %v77, 7
    %v79 = vsub.s32 0, %v78
    %v80 = vrot.slane %v67, %v79
    %v90 = vcombine.low %v68, %v69
    %v91 = vcombine.low %v70, %v71
    %v93 = vunpack.c.l.s4 1983009808
    %v94 = vunpack.c.0.s8 %v93
    %v95 = vlaneseq
    %v96 = vshrl.u32 %v95, 7
    %v97 = vsub.s32 %v94, %v96
    %v98 = vrot.slane %v90, %v97
    %v100 = vunpack.c.l.s4 1983009808
    %v101 = vunpack.c.0.s8 %v100
    %v102 = vlaneseq
    %v103 = vshrl.u32 %v102, 7
    %v104 = vsub.s32 %v101, %v103
    %v105 = vrot.slane %v91, %v104
    %v106 = vcombine.low %v98, %v105
    %v107 = vcombine.low %v72, %v73
    %v108 = vcombine.low %v74, %v75
    %v110 = vunpack.c.l.s4 1983009808
    %v111 = vunpack.c.0.s8 %v110
    %v112 = vlaneseq
    %v113 = vshrl.u32 %v112, 7
    %v114 = vsub.s32 %v111, %v113
    %v115 = vrot.slane %v107, %v114
    %v117 = vunpack.c.l.s4 1983009808
    %v118 = vunpack.c.0.s8 %v117
    %v119 = vlaneseq
    %v120 = vshrl.u32 %v119, 7
    %v121 = vsub.s32 %v118, %v120
    %v122 = vrot.slane %v108, %v121
    %v123 = vcombine.low %v115, %v122
    %vm124 = vcmask 261120
    %v125 = vsel %vm124, %v106, 0
    %v127 = vsel %vm124, %v123, 0
    %129 = vmatprep.subr.mxu0 0.0
    %130 = vmatpush1.msra.mxu0 %v59
    %131 = vmatprep.subr.mxu0 0.0
    %132 = vmatpush1.msra.mxu0 %v60
    %133 = vmatprep.subr.mxu0 0.0
    %134 = vmatpush1.msra.mxu0 %v61
    %135 = vmatprep.subr.mxu0 0.0
    %136 = vmatpush1.msra.mxu0 %v62
    %137 = vmatprep.subr.mxu0 0.0
    %138 = vmatpush1.msra.mxu0 0.0
    %139 = vmatprep.subr.mxu0 0.0
    %140 = vmatpush1.msra.mxu0 0.0
    %141 = vmatprep.subr.mxu0 0.0
    %142 = vmatpush1.msra.mxu0 0.0
    %143 = vmatprep.subr.mxu0 0.0
    %144 = vmatpush1.msra.mxu0 0.0
    %145 = vmatprep.subr.mxu0 0.0
    %146 = vmatpush1.msra.mxu0 0.0
    %147 = vmatprep.subr.mxu0 0.0
    %148 = vmatpush1.msra.mxu0 0.0
    %149 = vmatprep.subr.mxu0 0.0
    %150 = vmatpush1.msra.mxu0 0.0
    %151 = vmatprep.subr.mxu0 0.0
    %152 = vmatpush1.msra.mxu0 0.0
    %153 = vmatprep.subr.mxu0 0.0
    %154 = vmatpush1.msra.mxu0 0.0
    %155 = vmatprep.subr.mxu0 0.0
    %156 = vmatpush1.msra.mxu0 0.0
    %157 = vmatprep.subr.mxu0 0.0
    %158 = vmatpush1.msra.mxu0 0.0
    %159 = vmatprep.subr.mxu0 0.0
    %160 = vmatpush1.msra.mxu0 0.0
    %161 = vmatprep.subr.mxu0 0.0
    %162 = vmatpush1.msra.mxu0 0.0
    %163 = vmatprep.subr.mxu0 0.0
    %164 = vmatpush1.msra.mxu0 0.0
    %165 = vmatprep.subr.mxu0 0.0
    %166 = vmatpush1.msra.mxu0 0.0
    %167 = vmatprep.subr.mxu0 0.0
    %168 = vmatpush1.msra.mxu0 0.0
    %169 = vmatprep.subr.mxu0 0.0
    %170 = vmatpush1.msra.mxu0 0.0
    %171 = vmatprep.subr.mxu0 0.0
    %172 = vmatpush1.msra.mxu0 0.0
    %173 = vmatprep.subr.mxu0 0.0
    %174 = vmatpush1.msra.mxu0 0.0
    %175 = vmatprep.subr.mxu0 0.0
    %176 = vmatpush1.msra.mxu0 0.0
    %177 = vmatprep.subr.mxu0 0.0
    %178 = vmatpush1.msra.mxu0 0.0
    %179 = vmatprep.subr.mxu0 0.0
    %180 = vmatpush1.msra.mxu0 0.0
    %181 = vmatprep.subr.mxu0 0.0
    %182 = vmatpush1.msra.mxu0 0.0
    %183 = vmatprep.subr.mxu0 0.0
    %184 = vmatpush1.msra.mxu0 0.0
    %185 = vmatprep.subr.mxu0 0.0
    %186 = vmatpush1.msra.mxu0 0.0
    %187 = vmatprep.subr.mxu0 0.0
    %188 = vmatpush1.msra.mxu0 0.0
    %189 = vmatprep.subr.mxu0 0.0
    %190 = vmatpush1.msra.mxu0 0.0
    %191 = vmatprep.subr.mxu0 0.0
    %192 = vmatpush1.msra.mxu0 0.0
    %193 = vmatprep.mubr.f32.mxu0 0.0
    %194 = vmatmul.mubr.f32.gmra.mrb[0].mxu0 %v125
    %v195 = vpop.f32.mrb[0].mxu0
    %v196 = vadd.f32 %v80, %v195
    %v197 = vpop.f32.mrb[0].mxu0
    %198 = vmatprep.mubr.f32.mxu0 0.0
    %199 = vmatmul.mubr.f32.gmra.mrb[0].mxu0 %v127
    %v200 = vpop.f32.mrb[0].mxu0
    %v201 = vadd.f32 %v80, %v200
    %v202 = vpop.f32.mrb[0].mxu0
    %203 = vdwg.mxu0
    %v205 = vsel %vm124, 0.0, 0
    %207 = vmatprep.subr.mxu0 0.0
    %208 = vmatpush1.msra.mxu0 %v63
    %209 = vmatprep.subr.mxu0 0.0
    %210 = vmatpush1.msra.mxu0 %v64
    %211 = vmatprep.subr.mxu0 0.0
    %212 = vmatpush1.msra.mxu0 %v65
    %213 = vmatprep.subr.mxu0 0.0
    %214 = vmatpush1.msra.mxu0 %v66
    %215 = vmatprep.subr.mxu0 0.0
    %216 = vmatpush1.msra.mxu0 0.0
    %217 = vmatprep.subr.mxu0 0.0
    %218 = vmatpush1.msra.mxu0 0.0
    %219 = vmatprep.subr.mxu0 0.0
    %220 = vmatpush1.msra.mxu0 0.0
    %221 = vmatprep.subr.mxu0 0.0
    %222 = vmatpush1.msra.mxu0 0.0
    %223 = vmatprep.subr.mxu0 0.0
    %224 = vmatpush1.msra.mxu0 0.0
    %225 = vmatprep.subr.mxu0 0.0
    %226 = vmatpush1.msra.mxu0 0.0
    %227 = vmatprep.subr.mxu0 0.0
    %228 = vmatpush1.msra.mxu0 0.0
    %229 = vmatprep.subr.mxu0 0.0
    %230 = vmatpush1.msra.mxu0 0.0
    %231 = vmatprep.subr.mxu0 0.0
    %232 = vmatpush1.msra.mxu0 0.0
    %233 = vmatprep.subr.mxu0 0.0
    %234 = vmatpush1.msra.mxu0 0.0
    %235 = vmatprep.subr.mxu0 0.0
    %236 = vmatpush1.msra.mxu0 0.0
    %237 = vmatprep.subr.mxu0 0.0
    %238 = vmatpush1.msra.mxu0 0.0
    %239 = vmatprep.subr.mxu0 0.0
    %240 = vmatpush1.msra.mxu0 0.0
    %241 = vmatprep.subr.mxu0 0.0
    %242 = vmatpush1.msra.mxu0 0.0
    %243 = vmatprep.subr.mxu0 0.0
    %244 = vmatpush1.msra.mxu0 0.0
    %245 = vmatprep.subr.mxu0 0.0
    %246 = vmatpush1.msra.mxu0 0.0
    %247 = vmatprep.subr.mxu0 0.0
    %248 = vmatpush1.msra.mxu0 0.0
    %249 = vmatprep.subr.mxu0 0.0
    %250 = vmatpush1.msra.mxu0 0.0
    %251 = vmatprep.subr.mxu0 0.0
    %252 = vmatpush1.msra.mxu0 0.0
    %253 = vmatprep.subr.mxu0 0.0
    %254 = vmatpush1.msra.mxu0 0.0
    %255 = vmatprep.subr.mxu0 0.0
    %256 = vmatpush1.msra.mxu0 0.0
    %257 = vmatprep.subr.mxu0 0.0
    %258 = vmatpush1.msra.mxu0 0.0
    %259 = vmatprep.subr.mxu0 0.0
    %260 = vmatpush1.msra.mxu0 0.0
    %261 = vmatprep.subr.mxu0 0.0
    %262 = vmatpush1.msra.mxu0 0.0
    %263 = vmatprep.subr.mxu0 0.0
    %264 = vmatpush1.msra.mxu0 0.0
    %265 = vmatprep.subr.mxu0 0.0
    %266 = vmatpush1.msra.mxu0 0.0
    %267 = vmatprep.subr.mxu0 0.0
    %268 = vmatpush1.msra.mxu0 0.0
    %269 = vmatprep.subr.mxu0 0.0
    %270 = vmatpush1.msra.mxu0 0.0
    %271 = vmatprep.mubr.f32.mxu0 0.0
    %272 = vmatmul.mubr.f32.gmra.mrb[0].mxu0 %v205
    %v273 = vpop.f32.mrb[0].mxu0
    %v274 = vadd.f32 0.0, %v273
    %v275 = vpop.f32.mrb[0].mxu0
    %276 = vdwg.mxu0
    %v277 = vadd.f32 %v196, %v274
    %v278 = vxor.u32 %v277, 2147483648
    %v279 = vmul.f32 %v278, 1.442695
    %v280 = vpow.pop %v279
    %v281 = vadd.f32 %v280, 1.0
    %v282 = vrcp.pop %v281
    %v283 = vmul.f32 1.0, %v282
    %v284 = vtanh.pop %v277
    %v285 = vmul.f32 %v283, 0.0
    %287 = vrot.lane.b32.xlu0 %v284, 64
    %v288 = vpop.permute.xlu0 %287
    %v290 = vmul.f32 %v283, %v288
    %292 = vrot.lane.b32.xlu0 %v290, 32
    %v293 = vpop.permute.xlu0 %292
    %v295 = vadd.f32 %v285, %v293
    %v296 = vtanh.pop %v295
    %298 = vrot.lane.b32.xlu0 %v296, 64
    %v299 = vpop.permute.xlu0 %298
    %v301 = vmul.f32 %v283, %v299
    %303 = vrot.lane.b32.xlu0 %v301, 32
    %v304 = vpop.permute.xlu0 %303
    %v305 = vsel %vm124, %v304, 0
    %307 = vmatprep.subr.mxu0 0.0
    %308 = vmatpush1.msra.mxu0 %v63
    %309 = vmatprep.subr.mxu0 0.0
    %310 = vmatpush1.msra.mxu0 %v64
    %311 = vmatprep.subr.mxu0 0.0
    %312 = vmatpush1.msra.mxu0 %v65
    %313 = vmatprep.subr.mxu0 0.0
    %314 = vmatpush1.msra.mxu0 %v66
    %315 = vmatprep.subr.mxu0 0.0
    %316 = vmatpush1.msra.mxu0 0.0
    %317 = vmatprep.subr.mxu0 0.0
    %318 = vmatpush1.msra.mxu0 0.0
    %319 = vmatprep.subr.mxu0 0.0
    %320 = vmatpush1.msra.mxu0 0.0
    %321 = vmatprep.subr.mxu0 0.0
    %322 = vmatpush1.msra.mxu0 0.0
    %323 = vmatprep.subr.mxu0 0.0
    %324 = vmatpush1.msra.mxu0 0.0
    %325 = vmatprep.subr.mxu0 0.0
    %326 = vmatpush1.msra.mxu0 0.0
    %327 = vmatprep.subr.mxu0 0.0
    %328 = vmatpush1.msra.mxu0 0.0
    %329 = vmatprep.subr.mxu0 0.0
    %330 = vmatpush1.msra.mxu0 0.0
    %331 = vmatprep.subr.mxu0 0.0
    %332 = vmatpush1.msra.mxu0 0.0
    %333 = vmatprep.subr.mxu0 0.0
    %334 = vmatpush1.msra.mxu0 0.0
    %335 = vmatprep.subr.mxu0 0.0
    %336 = vmatpush1.msra.mxu0 0.0
    %337 = vmatprep.subr.mxu0 0.0
    %338 = vmatpush1.msra.mxu0 0.0
    %339 = vmatprep.subr.mxu0 0.0
    %340 = vmatpush1.msra.mxu0 0.0
    %341 = vmatprep.subr.mxu0 0.0
    %342 = vmatpush1.msra.mxu0 0.0
    %343 = vmatprep.subr.mxu0 0.0
    %344 = vmatpush1.msra.mxu0 0.0
    %345 = vmatprep.subr.mxu0 0.0
    %346 = vmatpush1.msra.mxu0 0.0
    %347 = vmatprep.subr.mxu0 0.0
    %348 = vmatpush1.msra.mxu0 0.0
    %349 = vmatprep.subr.mxu0 0.0
    %350 = vmatpush1.msra.mxu0 0.0
    %351 = vmatprep.subr.mxu0 0.0
    %352 = vmatpush1.msra.mxu0 0.0
    %353 = vmatprep.subr.mxu0 0.0
    %354 = vmatpush1.msra.mxu0 0.0
    %355 = vmatprep.subr.mxu0 0.0
    %356 = vmatpush1.msra.mxu0 0.0
    %357 = vmatprep.subr.mxu0 0.0
    %358 = vmatpush1.msra.mxu0 0.0
    %359 = vmatprep.subr.mxu0 0.0
    %360 = vmatpush1.msra.mxu0 0.0
    %361 = vmatprep.subr.mxu0 0.0
    %362 = vmatpush1.msra.mxu0 0.0
    %363 = vmatprep.subr.mxu0 0.0
    %364 = vmatpush1.msra.mxu0 0.0
    %365 = vmatprep.subr.mxu0 0.0
    %366 = vmatpush1.msra.mxu0 0.0
    %367 = vmatprep.subr.mxu0 0.0
    %368 = vmatpush1.msra.mxu0 0.0
    %369 = vmatprep.subr.mxu0 0.0
    %370 = vmatpush1.msra.mxu0 0.0
    %371 = vmatprep.mubr.f32.mxu0 0.0
    %372 = vmatmul.mubr.f32.gmra.mrb[0].mxu0 %v305
    %v373 = vpop.f32.mrb[0].mxu0
    %v374 = vadd.f32 0.0, %v373
    %v375 = vpop.f32.mrb[0].mxu0
    %376 = vdwg.mxu0
    %v378 = vrot.slane %v374, 6
    %v380 = vadd.f32 %v196, %v378
    %v381 = vxor.u32 %v380, 2147483648
    %v382 = vmul.f32 %v381, 1.442695
    %v383 = vpow.pop %v382
    %v384 = vadd.f32 %v383, 1.0
    %v385 = vrcp.pop %v384
    %v386 = vmul.f32 1.0, %v385
    %v387 = vtanh.pop %v380
    %v389 = vrot.slane %v295, 6
    %v391 = vmul.f32 %v386, %v389
    %393 = vrot.lane.b32.xlu0 %v387, 64
    %v394 = vpop.permute.xlu0 %393
    %v396 = vmul.f32 %v386, %v394
    %398 = vrot.lane.b32.xlu0 %v396, 32
    %v399 = vpop.permute.xlu0 %398
    %v401 = vadd.f32 %v391, %v399
    %v402 = vtanh.pop %v401
    %404 = vrot.lane.b32.xlu0 %v402, 64
    %v405 = vpop.permute.xlu0 %404
    %v407 = vmul.f32 %v386, %v405
    %v409 = vrot.slane %v407, 2
    %410 = vrot.lane.b32.xlu0 %v409, 32
    %v411 = vpop.permute.xlu0 %410
    %v412 = vsel %vm124, %v411, 0
    %414 = vmatprep.subr.mxu0 0.0
    %415 = vmatpush1.msra.mxu0 %v63
    %416 = vmatprep.subr.mxu0 0.0
    %417 = vmatpush1.msra.mxu0 %v64
    %418 = vmatprep.subr.mxu0 0.0
    %419 = vmatpush1.msra.mxu0 %v65
    %420 = vmatprep.subr.mxu0 0.0
    %421 = vmatpush1.msra.mxu0 %v66
    %422 = vmatprep.subr.mxu0 0.0
    %423 = vmatpush1.msra.mxu0 0.0
    %424 = vmatprep.subr.mxu0 0.0
    %425 = vmatpush1.msra.mxu0 0.0
    %426 = vmatprep.subr.mxu0 0.0
    %427 = vmatpush1.msra.mxu0 0.0
    %428 = vmatprep.subr.mxu0 0.0
    %429 = vmatpush1.msra.mxu0 0.0
    %430 = vmatprep.subr.mxu0 0.0
    %431 = vmatpush1.msra.mxu0 0.0
    %432 = vmatprep.subr.mxu0 0.0
    %433 = vmatpush1.msra.mxu0 0.0
    %434 = vmatprep.subr.mxu0 0.0
    %435 = vmatpush1.msra.mxu0 0.0
    %436 = vmatprep.subr.mxu0 0.0
    %437 = vmatpush1.msra.mxu0 0.0
    %438 = vmatprep.subr.mxu0 0.0
    %439 = vmatpush1.msra.mxu0 0.0
    %440 = vmatprep.subr.mxu0 0.0
    %441 = vmatpush1.msra.mxu0 0.0
    %442 = vmatprep.subr.mxu0 0.0
    %443 = vmatpush1.msra.mxu0 0.0
    %444 = vmatprep.subr.mxu0 0.0
    %445 = vmatpush1.msra.mxu0 0.0
    %446 = vmatprep.subr.mxu0 0.0
    %447 = vmatpush1.msra.mxu0 0.0
    %448 = vmatprep.subr.mxu0 0.0
    %449 = vmatpush1.msra.mxu0 0.0
    %450 = vmatprep.subr.mxu0 0.0
    %451 = vmatpush1.msra.mxu0 0.0
    %452 = vmatprep.subr.mxu0 0.0
    %453 = vmatpush1.msra.mxu0 0.0
    %454 = vmatprep.subr.mxu0 0.0
    %455 = vmatpush1.msra.mxu0 0.0
    %456 = vmatprep.subr.mxu0 0.0
    %457 = vmatpush1.msra.mxu0 0.0
    %458 = vmatprep.subr.mxu0 0.0
    %459 = vmatpush1.msra.mxu0 0.0
    %460 = vmatprep.subr.mxu0 0.0
    %461 = vmatpush1.msra.mxu0 0.0
    %462 = vmatprep.subr.mxu0 0.0
    %463 = vmatpush1.msra.mxu0 0.0
    %464 = vmatprep.subr.mxu0 0.0
    %465 = vmatpush1.msra.mxu0 0.0
    %466 = vmatprep.subr.mxu0 0.0
    %467 = vmatpush1.msra.mxu0 0.0
    %468 = vmatprep.subr.mxu0 0.0
    %469 = vmatpush1.msra.mxu0 0.0
    %470 = vmatprep.subr.mxu0 0.0
    %471 = vmatpush1.msra.mxu0 0.0
    %472 = vmatprep.subr.mxu0 0.0
    %473 = vmatpush1.msra.mxu0 0.0
    %474 = vmatprep.subr.mxu0 0.0
    %475 = vmatpush1.msra.mxu0 0.0
    %476 = vmatprep.subr.mxu0 0.0
    %477 = vmatpush1.msra.mxu0 0.0
    %478 = vmatprep.mubr.f32.mxu0 0.0
    %479 = vmatmul.mubr.f32.gmra.mrb[0].mxu0 %v412
    %v480 = vpop.f32.mrb[0].mxu0
    %v481 = vadd.f32 0.0, %v480
    %v482 = vpop.f32.mrb[0].mxu0
    %483 = vdwg.mxu0
    %v485 = vrot.slane %v481, 4
    %v487 = vadd.f32 %v196, %v485
    %v488 = vxor.u32 %v487, 2147483648
    %v489 = vmul.f32 %v488, 1.442695
    %v490 = vpow.pop %v489
    %v491 = vadd.f32 %v490, 1.0
    %v492 = vrcp.pop %v491
    %v493 = vmul.f32 1.0, %v492
    %v494 = vtanh.pop %v487
    %v496 = vrot.slane %v401, 6
    %v498 = vmul.f32 %v493, %v496
    %500 = vrot.lane.b32.xlu0 %v494, 64
    %v501 = vpop.permute.xlu0 %500
    %v503 = vmul.f32 %v493, %v501
    %505 = vrot.lane.b32.xlu0 %v503, 32
    %v506 = vpop.permute.xlu0 %505
    %v508 = vadd.f32 %v498, %v506
    %v509 = vtanh.pop %v508
    %511 = vrot.lane.b32.xlu0 %v509, 64
    %v512 = vpop.permute.xlu0 %511
    %v514 = vmul.f32 %v493, %v512
    %v516 = vrot.slane %v514, 4
    %517 = vrot.lane.b32.xlu0 %v516, 32
    %v518 = vpop.permute.xlu0 %517
    %v519 = vsel %vm124, %v518, 0
    %521 = vmatprep.subr.mxu0 0.0
    %522 = vmatpush1.msra.mxu0 %v63
    %523 = vmatprep.subr.mxu0 0.0
    %524 = vmatpush1.msra.mxu0 %v64
    %525 = vmatprep.subr.mxu0 0.0
    %526 = vmatpush1.msra.mxu0 %v65
    %527 = vmatprep.subr.mxu0 0.0
    %528 = vmatpush1.msra.mxu0 %v66
    %529 = vmatprep.subr.mxu0 0.0
    %530 = vmatpush1.msra.mxu0 0.0
    %531 = vmatprep.subr.mxu0 0.0
    %532 = vmatpush1.msra.mxu0 0.0
    %533 = vmatprep.subr.mxu0 0.0
    %534 = vmatpush1.msra.mxu0 0.0
    %535 = vmatprep.subr.mxu0 0.0
    %536 = vmatpush1.msra.mxu0 0.0
    %537 = vmatprep.subr.mxu0 0.0
    %538 = vmatpush1.msra.mxu0 0.0
    %539 = vmatprep.subr.mxu0 0.0
    %540 = vmatpush1.msra.mxu0 0.0
    %541 = vmatprep.subr.mxu0 0.0
    %542 = vmatpush1.msra.mxu0 0.0
    %543 = vmatprep.subr.mxu0 0.0
    %544 = vmatpush1.msra.mxu0 0.0
    %545 = vmatprep.subr.mxu0 0.0
    %546 = vmatpush1.msra.mxu0 0.0
    %547 = vmatprep.subr.mxu0 0.0
    %548 = vmatpush1.msra.mxu0 0.0
    %549 = vmatprep.subr.mxu0 0.0
    %550 = vmatpush1.msra.mxu0 0.0
    %551 = vmatprep.subr.mxu0 0.0
    %552 = vmatpush1.msra.mxu0 0.0
    %553 = vmatprep.subr.mxu0 0.0
    %554 = vmatpush1.msra.mxu0 0.0
    %555 = vmatprep.subr.mxu0 0.0
    %556 = vmatpush1.msra.mxu0 0.0
    %557 = vmatprep.subr.mxu0 0.0
    %558 = vmatpush1.msra.mxu0 0.0
    %559 = vmatprep.subr.mxu0 0.0
    %560 = vmatpush1.msra.mxu0 0.0
    %561 = vmatprep.subr.mxu0 0.0
    %562 = vmatpush1.msra.mxu0 0.0
    %563 = vmatprep.subr.mxu0 0.0
    %564 = vmatpush1.msra.mxu0 0.0
    %565 = vmatprep.subr.mxu0 0.0
    %566 = vmatpush1.msra.mxu0 0.0
    %567 = vmatprep.subr.mxu0 0.0
    %568 = vmatpush1.msra.mxu0 0.0
    %569 = vmatprep.subr.mxu0 0.0
    %570 = vmatpush1.msra.mxu0 0.0
    %571 = vmatprep.subr.mxu0 0.0
    %572 = vmatpush1.msra.mxu0 0.0
    %573 = vmatprep.subr.mxu0 0.0
    %574 = vmatpush1.msra.mxu0 0.0
    %575 = vmatprep.subr.mxu0 0.0
    %576 = vmatpush1.msra.mxu0 0.0
    %577 = vmatprep.subr.mxu0 0.0
    %578 = vmatpush1.msra.mxu0 0.0
    %579 = vmatprep.subr.mxu0 0.0
    %580 = vmatpush1.msra.mxu0 0.0
    %581 = vmatprep.subr.mxu0 0.0
    %582 = vmatpush1.msra.mxu0 0.0
    %583 = vmatprep.subr.mxu0 0.0
    %584 = vmatpush1.msra.mxu0 0.0
    %585 = vmatprep.mubr.f32.mxu0 0.0
    %586 = vmatmul.mubr.f32.gmra.mrb[0].mxu0 %v519
    %v587 = vpop.f32.mrb[0].mxu0
    %v588 = vadd.f32 0.0, %v587
    %v589 = vpop.f32.mrb[0].mxu0
    %590 = vdwg.mxu0
    %v592 = vrot.slane %v588, 2
    %v594 = vadd.f32 %v196, %v592
    %v595 = vxor.u32 %v594, 2147483648
    %v596 = vmul.f32 %v595, 1.442695
    %v597 = vpow.pop %v596
    %v598 = vadd.f32 %v597, 1.0
    %v599 = vrcp.pop %v598
    %v600 = vmul.f32 1.0, %v599
    %v601 = vtanh.pop %v594
    %v603 = vrot.slane %v508, 6
    %v605 = vmul.f32 %v600, %v603
    %607 = vrot.lane.b32.xlu0 %v601, 64
    %v608 = vpop.permute.xlu0 %607
    %v610 = vmul.f32 %v600, %v608
    %612 = vrot.lane.b32.xlu0 %v610, 32
    %v613 = vpop.permute.xlu0 %612
    %v615 = vadd.f32 %v605, %v613
    %v616 = vtanh.pop %v615
    %618 = vrot.lane.b32.xlu0 %v616, 64
    %v619 = vpop.permute.xlu0 %618
    %v621 = vmul.f32 %v600, %v619
    %v623 = vrot.slane %v621, 6
    %624 = vrot.lane.b32.xlu0 %v623, 32
    %v625 = vpop.permute.xlu0 %624
    %v626 = vsel %vm124, %v625, 0
    %628 = vmatprep.subr.mxu0 0.0
    %629 = vmatpush1.msra.mxu0 %v63
    %630 = vmatprep.subr.mxu0 0.0
    %631 = vmatpush1.msra.mxu0 %v64
    %632 = vmatprep.subr.mxu0 0.0
    %633 = vmatpush1.msra.mxu0 %v65
    %634 = vmatprep.subr.mxu0 0.0
    %635 = vmatpush1.msra.mxu0 %v66
    %636 = vmatprep.subr.mxu0 0.0
    %637 = vmatpush1.msra.mxu0 0.0
    %638 = vmatprep.subr.mxu0 0.0
    %639 = vmatpush1.msra.mxu0 0.0
    %640 = vmatprep.subr.mxu0 0.0
    %641 = vmatpush1.msra.mxu0 0.0
    %642 = vmatprep.subr.mxu0 0.0
    %643 = vmatpush1.msra.mxu0 0.0
    %644 = vmatprep.subr.mxu0 0.0
    %645 = vmatpush1.msra.mxu0 0.0
    %646 = vmatprep.subr.mxu0 0.0
    %647 = vmatpush1.msra.mxu0 0.0
    %648 = vmatprep.subr.mxu0 0.0
    %649 = vmatpush1.msra.mxu0 0.0
    %650 = vmatprep.subr.mxu0 0.0
    %651 = vmatpush1.msra.mxu0 0.0
    %652 = vmatprep.subr.mxu0 0.0
    %653 = vmatpush1.msra.mxu0 0.0
    %654 = vmatprep.subr.mxu0 0.0
    %655 = vmatpush1.msra.mxu0 0.0
    %656 = vmatprep.subr.mxu0 0.0
    %657 = vmatpush1.msra.mxu0 0.0
    %658 = vmatprep.subr.mxu0 0.0
    %659 = vmatpush1.msra.mxu0 0.0
    %660 = vmatprep.subr.mxu0 0.0
    %661 = vmatpush1.msra.mxu0 0.0
    %662 = vmatprep.subr.mxu0 0.0
    %663 = vmatpush1.msra.mxu0 0.0
    %664 = vmatprep.subr.mxu0 0.0
    %665 = vmatpush1.msra.mxu0 0.0
    %666 = vmatprep.subr.mxu0 0.0
    %667 = vmatpush1.msra.mxu0 0.0
    %668 = vmatprep.subr.mxu0 0.0
    %669 = vmatpush1.msra.mxu0 0.0
    %670 = vmatprep.subr.mxu0 0.0
    %671 = vmatpush1.msra.mxu0 0.0
    %672 = vmatprep.subr.mxu0 0.0
    %673 = vmatpush1.msra.mxu0 0.0
    %674 = vmatprep.subr.mxu0 0.0
    %675 = vmatpush1.msra.mxu0 0.0
    %676 = vmatprep.subr.mxu0 0.0
    %677 = vmatpush1.msra.mxu0 0.0
    %678 = vmatprep.subr.mxu0 0.0
    %679 = vmatpush1.msra.mxu0 0.0
    %680 = vmatprep.subr.mxu0 0.0
    %681 = vmatpush1.msra.mxu0 0.0
    %682 = vmatprep.subr.mxu0 0.0
    %683 = vmatpush1.msra.mxu0 0.0
    %684 = vmatprep.subr.mxu0 0.0
    %685 = vmatpush1.msra.mxu0 0.0
    %686 = vmatprep.subr.mxu0 0.0
    %687 = vmatpush1.msra.mxu0 0.0
    %688 = vmatprep.subr.mxu0 0.0
    %689 = vmatpush1.msra.mxu0 0.0
    %690 = vmatprep.subr.mxu0 0.0
    %691 = vmatpush1.msra.mxu0 0.0
    %692 = vmatprep.mubr.f32.mxu0 0.0
    %693 = vmatmul.mubr.f32.gmra.mrb[0].mxu0 %v626
    %v694 = vpop.f32.mrb[0].mxu0
    %v695 = vadd.f32 0.0, %v694
    %v696 = vpop.f32.mrb[0].mxu0
    %697 = vdwg.mxu0
    %v698 = vadd.f32 %v201, %v695
    %v699 = vxor.u32 %v698, 2147483648
    %v700 = vmul.f32 %v699, 1.442695
    %v701 = vpow.pop %v700
    %v702 = vadd.f32 %v701, 1.0
    %v703 = vrcp.pop %v702
    %v704 = vmul.f32 1.0, %v703
    %v705 = vtanh.pop %v698
    %v707 = vrot.slane %v615, 6
    %v709 = vmul.f32 %v704, %v707
    %711 = vrot.lane.b32.xlu0 %v705, 64
    %v712 = vpop.permute.xlu0 %711
    %v714 = vmul.f32 %v704, %v712
    %716 = vrot.lane.b32.xlu0 %v714, 32
    %v717 = vpop.permute.xlu0 %716
    %v719 = vadd.f32 %v709, %v717
    %v720 = vtanh.pop %v719
    %722 = vrot.lane.b32.xlu0 %v720, 64
    %v723 = vpop.permute.xlu0 %722
    %v725 = vmul.f32 %v704, %v723
    %727 = vrot.lane.b32.xlu0 %v725, 32
    %v728 = vpop.permute.xlu0 %727
    %v729 = vsel %vm124, %v728, 0
    %731 = vmatprep.subr.mxu0 0.0
    %732 = vmatpush1.msra.mxu0 %v63
    %733 = vmatprep.subr.mxu0 0.0
    %734 = vmatpush1.msra.mxu0 %v64
    %735 = vmatprep.subr.mxu0 0.0
    %736 = vmatpush1.msra.mxu0 %v65
    %737 = vmatprep.subr.mxu0 0.0
    %738 = vmatpush1.msra.mxu0 %v66
    %739 = vmatprep.subr.mxu0 0.0
    %740 = vmatpush1.msra.mxu0 0.0
    %741 = vmatprep.subr.mxu0 0.0
    %742 = vmatpush1.msra.mxu0 0.0
    %743 = vmatprep.subr.mxu0 0.0
    %744 = vmatpush1.msra.mxu0 0.0
    %745 = vmatprep.subr.mxu0 0.0
    %746 = vmatpush1.msra.mxu0 0.0
    %747 = vmatprep.subr.mxu0 0.0
    %748 = vmatpush1.msra.mxu0 0.0
    %749 = vmatprep.subr.mxu0 0.0
    %750 = vmatpush1.msra.mxu0 0.0
    %751 = vmatprep.subr.mxu0 0.0
    %752 = vmatpush1.msra.mxu0 0.0
    %753 = vmatprep.subr.mxu0 0.0
    %754 = vmatpush1.msra.mxu0 0.0
    %755 = vmatprep.subr.mxu0 0.0
    %756 = vmatpush1.msra.mxu0 0.0
    %757 = vmatprep.subr.mxu0 0.0
    %758 = vmatpush1.msra.mxu0 0.0
    %759 = vmatprep.subr.mxu0 0.0
    %760 = vmatpush1.msra.mxu0 0.0
    %761 = vmatprep.subr.mxu0 0.0
    %762 = vmatpush1.msra.mxu0 0.0
    %763 = vmatprep.subr.mxu0 0.0
    %764 = vmatpush1.msra.mxu0 0.0
    %765 = vmatprep.subr.mxu0 0.0
    %766 = vmatpush1.msra.mxu0 0.0
    %767 = vmatprep.subr.mxu0 0.0
    %768 = vmatpush1.msra.mxu0 0.0
    %769 = vmatprep.subr.mxu0 0.0
    %770 = vmatpush1.msra.mxu0 0.0
    %771 = vmatprep.subr.mxu0 0.0
    %772 = vmatpush1.msra.mxu0 0.0
    %773 = vmatprep.subr.mxu0 0.0
    %774 = vmatpush1.msra.mxu0 0.0
    %775 = vmatprep.subr.mxu0 0.0
    %776 = vmatpush1.msra.mxu0 0.0
    %777 = vmatprep.subr.mxu0 0.0
    %778 = vmatpush1.msra.mxu0 0.0
    %779 = vmatprep.subr.mxu0 0.0
    %780 = vmatpush1.msra.mxu0 0.0
    %781 = vmatprep.subr.mxu0 0.0
    %782 = vmatpush1.msra.mxu0 0.0
    %783 = vmatprep.subr.mxu0 0.0
    %784 = vmatpush1.msra.mxu0 0.0
    %785 = vmatprep.subr.mxu0 0.0
    %786 = vmatpush1.msra.mxu0 0.0
    %787 = vmatprep.subr.mxu0 0.0
    %788 = vmatpush1.msra.mxu0 0.0
    %789 = vmatprep.subr.mxu0 0.0
    %790 = vmatpush1.msra.mxu0 0.0
    %791 = vmatprep.subr.mxu0 0.0
    %792 = vmatpush1.msra.mxu0 0.0
    %793 = vmatprep.subr.mxu0 0.0
    %794 = vmatpush1.msra.mxu0 0.0
    %795 = vmatprep.mubr.f32.mxu0 0.0
    %796 = vmatmul.mubr.f32.gmra.mrb[0].mxu0 %v729
    %v797 = vpop.f32.mrb[0].mxu0
    %v798 = vadd.f32 0.0, %v797
    %v799 = vpop.f32.mrb[0].mxu0
    %800 = vdwg.mxu0
    %v802 = vrot.slane %v798, 6
    %v804 = vadd.f32 %v201, %v802
    %v805 = vxor.u32 %v804, 2147483648
    %v806 = vmul.f32 %v805, 1.442695
    %v807 = vpow.pop %v806
    %v808 = vadd.f32 %v807, 1.0
    %v809 = vrcp.pop %v808
    %v810 = vmul.f32 1.0, %v809
    %v811 = vtanh.pop %v804
    %v813 = vrot.slane %v719, 6
    %v815 = vmul.f32 %v810, %v813
    %817 = vrot.lane.b32.xlu0 %v811, 64
    %v818 = vpop.permute.xlu0 %817
    %v820 = vmul.f32 %v810, %v818
    %822 = vrot.lane.b32.xlu0 %v820, 32
    %v823 = vpop.permute.xlu0 %822
    %v825 = vadd.f32 %v815, %v823
    %v826 = vtanh.pop %v825
    %828 = vrot.lane.b32.xlu0 %v826, 64
    %v829 = vpop.permute.xlu0 %828
    %v831 = vmul.f32 %v810, %v829
    %v833 = vrot.slane %v831, 2
    %834 = vrot.lane.b32.xlu0 %v833, 32
    %v835 = vpop.permute.xlu0 %834
    %v836 = vsel %vm124, %v835, 0
    %838 = vmatprep.subr.mxu0 0.0
    %839 = vmatpush1.msra.mxu0 %v63
    %840 = vmatprep.subr.mxu0 0.0
    %841 = vmatpush1.msra.mxu0 %v64
    %842 = vmatprep.subr.mxu0 0.0
    %843 = vmatpush1.msra.mxu0 %v65
    %844 = vmatprep.subr.mxu0 0.0
    %845 = vmatpush1.msra.mxu0 %v66
    %846 = vmatprep.subr.mxu0 0.0
    %847 = vmatpush1.msra.mxu0 0.0
    %848 = vmatprep.subr.mxu0 0.0
    %849 = vmatpush1.msra.mxu0 0.0
    %850 = vmatprep.subr.mxu0 0.0
    %851 = vmatpush1.msra.mxu0 0.0
    %852 = vmatprep.subr.mxu0 0.0
    %853 = vmatpush1.msra.mxu0 0.0
    %854 = vmatprep.subr.mxu0 0.0
    %855 = vmatpush1.msra.mxu0 0.0
    %856 = vmatprep.subr.mxu0 0.0
    %857 = vmatpush1.msra.mxu0 0.0
    %858 = vmatprep.subr.mxu0 0.0
    %859 = vmatpush1.msra.mxu0 0.0
    %860 = vmatprep.subr.mxu0 0.0
    %861 = vmatpush1.msra.mxu0 0.0
    %862 = vmatprep.subr.mxu0 0.0
    %863 = vmatpush1.msra.mxu0 0.0
    %864 = vmatprep.subr.mxu0 0.0
    %865 = vmatpush1.msra.mxu0 0.0
    %866 = vmatprep.subr.mxu0 0.0
    %867 = vmatpush1.msra.mxu0 0.0
    %868 = vmatprep.subr.mxu0 0.0
    %869 = vmatpush1.msra.mxu0 0.0
    %870 = vmatprep.subr.mxu0 0.0
    %871 = vmatpush1.msra.mxu0 0.0
    %872 = vmatprep.subr.mxu0 0.0
    %873 = vmatpush1.msra.mxu0 0.0
    %874 = vmatprep.subr.mxu0 0.0
    %875 = vmatpush1.msra.mxu0 0.0
    %876 = vmatprep.subr.mxu0 0.0
    %877 = vmatpush1.msra.mxu0 0.0
    %878 = vmatprep.subr.mxu0 0.0
    %879 = vmatpush1.msra.mxu0 0.0
    %880 = vmatprep.subr.mxu0 0.0
    %881 = vmatpush1.msra.mxu0 0.0
    %882 = vmatprep.subr.mxu0 0.0
    %883 = vmatpush1.msra.mxu0 0.0
    %884 = vmatprep.subr.mxu0 0.0
    %885 = vmatpush1.msra.mxu0 0.0
    %886 = vmatprep.subr.mxu0 0.0
    %887 = vmatpush1.msra.mxu0 0.0
    %888 = vmatprep.subr.mxu0 0.0
    %889 = vmatpush1.msra.mxu0 0.0
    %890 = vmatprep.subr.mxu0 0.0
    %891 = vmatpush1.msra.mxu0 0.0
    %892 = vmatprep.subr.mxu0 0.0
    %893 = vmatpush1.msra.mxu0 0.0
    %894 = vmatprep.subr.mxu0 0.0
    %895 = vmatpush1.msra.mxu0 0.0
    %896 = vmatprep.subr.mxu0 0.0
    %897 = vmatpush1.msra.mxu0 0.0
    %898 = vmatprep.subr.mxu0 0.0
    %899 = vmatpush1.msra.mxu0 0.0
    %900 = vmatprep.subr.mxu0 0.0
    %901 = vmatpush1.msra.mxu0 0.0
    %902 = vmatprep.mubr.f32.mxu0 0.0
    %903 = vmatmul.mubr.f32.gmra.mrb[0].mxu0 %v836
    %v904 = vpop.f32.mrb[0].mxu0
    %v905 = vadd.f32 0.0, %v904
    %v906 = vpop.f32.mrb[0].mxu0
    %907 = vdwg.mxu0
    %v909 = vrot.slane %v905, 4
    %v911 = vadd.f32 %v201, %v909
    %v912 = vxor.u32 %v911, 2147483648
    %v913 = vmul.f32 %v912, 1.442695
    %v914 = vpow.pop %v913
    %v915 = vadd.f32 %v914, 1.0
    %v916 = vrcp.pop %v915
    %v917 = vmul.f32 1.0, %v916
    %v918 = vtanh.pop %v911
    %v920 = vrot.slane %v825, 6
    %v922 = vmul.f32 %v917, %v920
    %924 = vrot.lane.b32.xlu0 %v918, 64
    %v925 = vpop.permute.xlu0 %924
    %v927 = vmul.f32 %v917, %v925
    %929 = vrot.lane.b32.xlu0 %v927, 32
    %v930 = vpop.permute.xlu0 %929
    %v932 = vadd.f32 %v922, %v930
    %v933 = vtanh.pop %v932
    %935 = vrot.lane.b32.xlu0 %v933, 64
    %v936 = vpop.permute.xlu0 %935
    %v938 = vmul.f32 %v917, %v936
    %v940 = vrot.slane %v938, 4
    %941 = vrot.lane.b32.xlu0 %v940, 32
    %v942 = vpop.permute.xlu0 %941
    %v943 = vsel %vm124, %v942, 0
    %945 = vmatprep.subr.mxu0 0.0
    %946 = vmatpush1.msra.mxu0 %v63
    %947 = vmatprep.subr.mxu0 0.0
    %948 = vmatpush1.msra.mxu0 %v64
    %949 = vmatprep.subr.mxu0 0.0
    %950 = vmatpush1.msra.mxu0 %v65
    %951 = vmatprep.subr.mxu0 0.0
    %952 = vmatpush1.msra.mxu0 %v66
    %953 = vmatprep.subr.mxu0 0.0
    %954 = vmatpush1.msra.mxu0 0.0
    %955 = vmatprep.subr.mxu0 0.0
    %956 = vmatpush1.msra.mxu0 0.0
    %957 = vmatprep.subr.mxu0 0.0
    %958 = vmatpush1.msra.mxu0 0.0
    %959 = vmatprep.subr.mxu0 0.0
    %960 = vmatpush1.msra.mxu0 0.0
    %961 = vmatprep.subr.mxu0 0.0
    %962 = vmatpush1.msra.mxu0 0.0
    %963 = vmatprep.subr.mxu0 0.0
    %964 = vmatpush1.msra.mxu0 0.0
    %965 = vmatprep.subr.mxu0 0.0
    %966 = vmatpush1.msra.mxu0 0.0
    %967 = vmatprep.subr.mxu0 0.0
    %968 = vmatpush1.msra.mxu0 0.0
    %969 = vmatprep.subr.mxu0 0.0
    %970 = vmatpush1.msra.mxu0 0.0
    %971 = vmatprep.subr.mxu0 0.0
    %972 = vmatpush1.msra.mxu0 0.0
    %973 = vmatprep.subr.mxu0 0.0
    %974 = vmatpush1.msra.mxu0 0.0
    %975 = vmatprep.subr.mxu0 0.0
    %976 = vmatpush1.msra.mxu0 0.0
    %977 = vmatprep.subr.mxu0 0.0
    %978 = vmatpush1.msra.mxu0 0.0
    %979 = vmatprep.subr.mxu0 0.0
    %980 = vmatpush1.msra.mxu0 0.0
    %981 = vmatprep.subr.mxu0 0.0
    %982 = vmatpush1.msra.mxu0 0.0
    %983 = vmatprep.subr.mxu0 0.0
    %984 = vmatpush1.msra.mxu0 0.0
    %985 = vmatprep.subr.mxu0 0.0
    %986 = vmatpush1.msra.mxu0 0.0
    %987 = vmatprep.subr.mxu0 0.0
    %988 = vmatpush1.msra.mxu0 0.0
    %989 = vmatprep.subr.mxu0 0.0
    %990 = vmatpush1.msra.mxu0 0.0
    %991 = vmatprep.subr.mxu0 0.0
    %992 = vmatpush1.msra.mxu0 0.0
    %993 = vmatprep.subr.mxu0 0.0
    %994 = vmatpush1.msra.mxu0 0.0
    %995 = vmatprep.subr.mxu0 0.0
    %996 = vmatpush1.msra.mxu0 0.0
    %997 = vmatprep.subr.mxu0 0.0
    %998 = vmatpush1.msra.mxu0 0.0
    %999 = vmatprep.subr.mxu0 0.0
    %1000 = vmatpush1.msra.mxu0 0.0
    %1001 = vmatprep.subr.mxu0 0.0
    %1002 = vmatpush1.msra.mxu0 0.0
    %1003 = vmatprep.subr.mxu0 0.0
    %1004 = vmatpush1.msra.mxu0 0.0
    %1005 = vmatprep.subr.mxu0 0.0
    %1006 = vmatpush1.msra.mxu0 0.0
    %1007 = vmatprep.subr.mxu0 0.0
    %1008 = vmatpush1.msra.mxu0 0.0
    %1009 = vmatprep.mubr.f32.mxu0 0.0
    %1010 = vmatmul.mubr.f32.gmra.mrb[0].mxu0 %v943
    %v1011 = vpop.f32.mrb[0].mxu0
    %v1012 = vadd.f32 0.0, %v1011
    %v1013 = vpop.f32.mrb[0].mxu0
    %1014 = vdwg.mxu0
    %v1016 = vrot.slane %v1012, 2
    %v1018 = vadd.f32 %v201, %v1016
    %v1019 = vxor.u32 %v1018, 2147483648
    %v1020 = vmul.f32 %v1019, 1.442695
    %v1021 = vpow.pop %v1020
    %v1022 = vadd.f32 %v1021, 1.0
    %v1023 = vrcp.pop %v1022
    %v1024 = vmul.f32 1.0, %v1023
    %v1025 = vtanh.pop %v1018
    %v1027 = vrot.slane %v932, 6
    %v1029 = vmul.f32 %v1024, %v1027
    %1031 = vrot.lane.b32.xlu0 %v1025, 64
    %v1032 = vpop.permute.xlu0 %1031
    %v1034 = vmul.f32 %v1024, %v1032
    %1036 = vrot.lane.b32.xlu0 %v1034, 32
    %v1037 = vpop.permute.xlu0 %1036
    %v1039 = vadd.f32 %v1029, %v1037
    %v1040 = vtanh.pop %v1039
    %1042 = vrot.lane.b32.xlu0 %v1040, 64
    %v1043 = vpop.permute.xlu0 %1042
    %v1045 = vmul.f32 %v1024, %v1043
    %1047 = vrot.lane.b32.xlu0 %v1045, 32
    %v1048 = vpop.permute.xlu0 %1047
    %vm1050 = vcmask 261126
    %1051 = vst.msk [vmem:[#allocation8 - $0x6] sm:$0xc0] %vm1050, %v1048
    // Predicated region
    $region30: #{tpu_custom_call.1} parent=1 // pred_check
      _
    $region31: #{tpu_custom_call.1} parent=1 // pred_check_branch
      %1053 = sbr.rel (0) target = $region33
    $region32: #{tpu_custom_call.1} parent=1 // pred_region
      %s1055 = ssub.s32 32, 32
      %1056 = vsyncadd [#allocation4], %s1055
      %s1058 = sshll.u32 [#allocation8], 4
      %s1059 = int_to_ptr.vmem [resolvable:$true] %s1058
      %1061 = dma.vmem_to_hbm [thread:$0]  %s1059, 32, %s4, [#allocation4]
    $region33: #{tpu_custom_call.1} parent=1 // pred_fallthru
      _
    // Predicated region
    $region34: #{tpu_custom_call.1} parent=1 // pred_check
      _
    $region35: #{tpu_custom_call.1} parent=1 // pred_check_branch
      %1063 = sbr.rel (0) target = $region37
    $region36: #{tpu_custom_call.1} parent=1 // pred_region
      %1064 = dma.done [#allocation4], 32
    $region37: #{tpu_custom_call.1} parent=1 // pred_fallthru
      _
    %1065 = vsyncpa [#allocation3], 1
    %1066 = vsyncpa [#allocation6], 1
    %1067 = vsyncpa [#allocation4], 1

</llo_original>
